<compile_context>
chip_gen: v5e
topology: v5e:2x2
jax: 0.10.0
libtpu: 0.0.40
codegen_flags: <defaults>
</compile_context>

<pallas_src>
import functools

import jax
import jax.numpy as jnp
from jax.experimental import pallas as pl
from jax.experimental.pallas import tpu as pltpu

HIDDEN = 64
LANES = 128            # fused hidden width and padded action-lane width
VAL_LANE = LANES - 1   # critic value lives in lane 127 of the fused head
BIG_NEG = -1e30        # finite "minus infinity" so 0 * BIG_NEG stays finite
_TB_MAX = 512          # batch tile (rows); sized well under v7x's 64 MiB VMEM


def _round_up(x, m):
    return ((x + m - 1) // m) * m


def _actor_critic_kernel(
    x_ref, act_ref,
    w1_ref, b1_ref, w2_ref, b2_ref, w3_ref, b3_ref,
    logp_all_ref, packed_ref,
    *, action_dim,
):
    # ----- fused actor+critic MLP (bf16 MXU inputs, f32 accumulation) -----
    x = x_ref[...].astype(jnp.bfloat16)                                   # [TB, S]
    h1 = jnp.tanh(
        jnp.dot(x, w1_ref[...], preferred_element_type=jnp.float32) + b1_ref[...]
    )                                                                     # [TB, 128]
    h2 = jnp.tanh(
        jnp.dot(h1.astype(jnp.bfloat16), w2_ref[...],
                preferred_element_type=jnp.float32) + b2_ref[...]
    )                                                                     # [TB, 128]
    out3 = (
        jnp.dot(h2.astype(jnp.bfloat16), w3_ref[...],
                preferred_element_type=jnp.float32) + b3_ref[...]
    )                                                                     # [TB, 128]

    # critic value sits in lane VAL_LANE of the fused head
    value = out3[:, VAL_LANE:VAL_LANE + 1]                                # [TB, 1]

    # actor logits: lanes >= action_dim (incl. the value lane) masked to -inf-ish
    lane = jax.lax.broadcasted_iota(jnp.int32, out3.shape, 1)             # [TB, 128]
    logits = jnp.where(lane < action_dim, out3, BIG_NEG)

    # softmax / log-softmax (numerically stable, f32)
    m = jnp.max(logits, axis=-1, keepdims=True)
    e = jnp.exp(logits - m)                                               # padded lanes -> 0
    s = jnp.sum(e, axis=-1, keepdims=True)
    probs = e * pl.reciprocal(s, approx=True)
    log_probs = (logits - m) - jnp.log(s)
    logp_all_ref[...] = log_probs                                         # [TB, 128]

    # Categorical.log_prob(action) via one-hot gather on the lane axis
    action = act_ref[...]                                                 # [TB, 1] int32
    onehot = (lane == action).astype(jnp.float32)
    logp_act = jnp.sum(onehot * log_probs, axis=-1, keepdims=True)        # [TB, 1]

    # Categorical.entropy(): padded lanes contribute exactly 0 (probs == 0)
    ent = -jnp.sum(probs * log_probs, axis=-1, keepdims=True)             # [TB, 1]

    # lane-dense packed slab: lane0 = logp(action), lane1 = entropy, lane2 = value
    sel0 = (lane == 0).astype(jnp.float32)
    sel1 = (lane == 1).astype(jnp.float32)
    sel2 = (lane == 2).astype(jnp.float32)
    packed_ref[...] = logp_act * sel0 + ent * sel1 + value * sel2         # [TB, 128]


@functools.partial(jax.jit, static_argnames=("action_dim",))
def _run_kernel(state, action, params, *, action_dim):
    """Single fused forward pass. Returns (log_probs [B,128], packed [B,128])."""
    B, S = state.shape
    TB = min(_TB_MAX, _round_up(B, 8))
    B_pad = _round_up(B, TB)
    if B_pad != B:
        state = jnp.pad(state, ((0, B_pad - B), (0, 0)))
        action = jnp.pad(action, ((0, B_pad - B),))
    action2d = action.reshape(B_pad, 1).astype(jnp.int32)
    grid = (B_pad // TB,)

    batch_spec = lambda shape: pl.BlockSpec(shape, lambda i: (i, 0))
    const_spec = lambda shape: pl.BlockSpec(shape, lambda i: (0, 0))  # resident weights

    logp_all, packed = pl.pallas_call(
        functools.partial(_actor_critic_kernel, action_dim=action_dim),
        out_shape=(
            jax.ShapeDtypeStruct((B_pad, LANES), jnp.float32),  # full log-probs
            jax.ShapeDtypeStruct((B_pad, LANES), jnp.float32),  # packed logp/ent/value
        ),
        grid=grid,
        in_specs=[
            batch_spec((TB, S)),                 # state tile
            batch_spec((TB, 1)),                 # action tile
            const_spec((S, LANES)),              # W1 (fused actor|critic)
            const_spec((1, LANES)),              # b1
            const_spec((LANES, LANES)),          # W2 (block diagonal)
            const_spec((1, LANES)),              # b2
            const_spec((LANES, LANES)),          # W3 (logits + value lane)
            const_spec((1, LANES)),              # b3
        ],
        out_specs=(
            batch_spec((TB, LANES)),
            batch_spec((TB, LANES)),
        ),
        compiler_params=pltpu.CompilerParams(
            dimension_semantics=("parallel",),   # megacore sharding on v7x
        ),
    )(
        state, action2d,
        params["w1"], params["b1"], params["w2"], params["b2"],
        params["w3"], params["b3"],
    )
    return logp_all[:B], packed[:B]


def actor_critic_evaluate(state, action, params, action_dim):
    """PyTorch ActorCritic.evaluate(): (action_logprobs, state_values, dist_entropy)."""
    _, packed = _run_kernel(state, action.astype(jnp.int32), params,
                            action_dim=action_dim)
    action_logprobs = packed[:, 0]
    dist_entropy = packed[:, 1]
    state_values = packed[:, 2:3]
    return action_logprobs, state_values, dist_entropy


def actor_critic_act(state, params, action_dim, sample_key):
    """PyTorch ActorCritic.act(): single kernel call + sampling glue in JAX."""
    B = state.shape[0]
    dummy_action = jnp.zeros((B,), dtype=jnp.int32)
    logp_all, _ = _run_kernel(state, dummy_action, params, action_dim=action_dim)
    action = jax.random.categorical(sample_key, logp_all[:, :action_dim], axis=-1)
    action_logprob = jnp.take_along_axis(logp_all, action[:, None].astype(jnp.int32),
                                         axis=-1)[:, 0]
    return action, action_logprob


def init_params(key, state_dim, action_dim, hidden=HIDDEN):
    """Per-layer PyTorch-Linear-style init: U(-1/sqrt(fan_in), 1/sqrt(fan_in))."""
    def linear(k, fan_in, fan_out):
        kw, kb = jax.random.split(k)
        bound = 1.0 / jnp.sqrt(jnp.float32(fan_in))
        w = jax.random.uniform(kw, (fan_in, fan_out), jnp.float32, -bound, bound)
        b = jax.random.uniform(kb, (1, fan_out), jnp.float32, -bound, bound)
        return w, b

    keys = jax.random.split(key, 6)
    aw1, ab1 = linear(keys[0], state_dim, hidden)
    aw2, ab2 = linear(keys[1], hidden, hidden)
    aw3, ab3 = linear(keys[2], hidden, action_dim)
    cw1, cb1 = linear(keys[3], state_dim, hidden)
    cw2, cb2 = linear(keys[4], hidden, hidden)
    cw3, cb3 = linear(keys[5], hidden, 1)
    return dict(
        aw1=aw1, ab1=ab1, aw2=aw2, ab2=ab2, aw3=aw3, ab3=ab3,
        cw1=cw1, cb1=cb1, cw2=cw2, cb2=cb2, cw3=cw3, cb3=cb3,
    )


def pack_params(p, state_dim, action_dim, hidden=HIDDEN):
    """Fuse actor/critic weights into 128-wide bf16 matmul operands."""
    assert action_dim <= LANES - 1, "action_dim must leave lane 127 free for the value"
    H2 = 2 * hidden
    w1 = jnp.concatenate([p["aw1"], p["cw1"]], axis=1)                    # [S, 128]
    b1 = jnp.concatenate([p["ab1"], p["cb1"]], axis=1)                    # [1, 128]

    w2 = jnp.zeros((H2, H2), jnp.float32)
    w2 = w2.at[:hidden, :hidden].set(p["aw2"]).at[hidden:, hidden:].set(p["cw2"])
    b2 = jnp.concatenate([p["ab2"], p["cb2"]], axis=1)                    # [1, 128]

    w3 = jnp.zeros((H2, LANES), jnp.float32)
    w3 = w3.at[:hidden, :action_dim].set(p["aw3"])
    w3 = w3.at[hidden:, VAL_LANE].set(p["cw3"][:, 0])
    b3 = jnp.zeros((1, LANES), jnp.float32)
    b3 = b3.at[0, :action_dim].set(p["ab3"][0])
    b3 = b3.at[0, VAL_LANE].set(p["cb3"][0, 0])

    return dict(
        w1=w1.astype(jnp.bfloat16), b1=b1,
        w2=w2.astype(jnp.bfloat16), b2=b2,
        w3=w3.astype(jnp.bfloat16), b3=b3,
    )


def _reference_evaluate(state, action, params):
    """Pure-JAX f32 reference mirroring PyTorch ActorCritic.evaluate()."""
    h = jnp.tanh(state @ params["aw1"] + params["ab1"])
    h = jnp.tanh(h @ params["aw2"] + params["ab2"])
    logits = h @ params["aw3"] + params["ab3"]
    probs = jax.nn.softmax(logits, axis=-1)
    logp_all = jax.nn.log_softmax(logits, axis=-1)
    logp = jnp.take_along_axis(logp_all, action[:, None], axis=-1)[:, 0]
    ent = -jnp.sum(probs * logp_all, axis=-1)
    c = jnp.tanh(state @ params["cw1"] + params["cb1"])
    c = jnp.tanh(c @ params["cw2"] + params["cb2"])
    val = c @ params["cw3"] + params["cb3"]
    return probs, logp, val, ent


if __name__ == "__main__":
    B, STATE_DIM, ACTION_DIM = 8, 32, 8

    key = jax.random.PRNGKey(0)
    k_params, k_state, k_action, k_sample = jax.random.split(key, 4)

    raw = init_params(k_params, STATE_DIM, ACTION_DIM)
    params = pack_params(raw, STATE_DIM, ACTION_DIM)
    state = jax.random.normal(k_state, (B, STATE_DIM), dtype=jnp.float32)
    action = jax.random.randint(k_action, (B,), 0, ACTION_DIM, dtype=jnp.int32)

    # evaluate(state, action) -> (action_logprobs, state_values, dist_entropy)
    action_logprobs, state_values, dist_entropy = actor_critic_evaluate(
        state, action, params, ACTION_DIM
    )
    jax.block_until_ready((action_logprobs, state_values, dist_entropy))

    # sanity check vs pure-JAX f32 reference (kernel uses bf16 matmul operands,
    # so tolerance is loosened accordingly)
    _, rlp, rv, re = _reference_evaluate(state, action, raw)
    assert jnp.allclose(action_logprobs, rlp, atol=5e-2), "logprob mismatch"
    assert jnp.allclose(state_values, rv, atol=5e-2), "value mismatch"
    assert jnp.allclose(dist_entropy, re, atol=5e-2), "entropy mismatch"

    # act(state): single kernel call, sampling done as glue in JAX
    sampled_action, sampled_logprob = actor_critic_act(state, params, ACTION_DIM, k_sample)
    jax.block_until_ready((sampled_action, sampled_logprob))
    _, rlp2, _, _ = _reference_evaluate(state, sampled_action.astype(jnp.int32), raw)
    assert jnp.allclose(sampled_logprob, rlp2, atol=5e-2), "act() logprob mismatch"

    print("KERNEL_OK")
</pallas_src>

<mosaic_0001>
module attributes {stable_mosaic.version = 11 : i64} {
  func.func @_actor_critic_kernel(%arg0: i32, %arg1: memref<8x32xf32, #tpu.memory_space<vmem>>, %arg2: memref<8x1xi32, #tpu.memory_space<vmem>>, %arg3: memref<32x128xbf16, #tpu.memory_space<vmem>>, %arg4: memref<1x128xf32, #tpu.memory_space<vmem>>, %arg5: memref<128x128xbf16, #tpu.memory_space<vmem>>, %arg6: memref<1x128xf32, #tpu.memory_space<vmem>>, %arg7: memref<128x128xbf16, #tpu.memory_space<vmem>>, %arg8: memref<1x128xf32, #tpu.memory_space<vmem>>, %arg9: memref<8x128xf32, #tpu.memory_space<vmem>>, %arg10: memref<8x128xf32, #tpu.memory_space<vmem>>) attributes {dimension_semantics = [#tpu.dimension_semantics<parallel>], iteration_bounds = array<i64: 1>, scalar_prefetch = 0 : i64, scratch_operands = 0 : i64, tpu.core_type = #tpu.core_type<tc>, window_params = [{transform_indices = @transform_0, window_bounds = array<i64: 8, 32>}, {transform_indices = @transform_1, window_bounds = array<i64: 8, 1>}, {pipeline_mode = #tpu.pipeline_mode<synchronous>, transform_indices = @transform_2, window_bounds = array<i64: 32, 128>}, {pipeline_mode = #tpu.pipeline_mode<synchronous>, transform_indices = @transform_3, window_bounds = array<i64: 1, 128>}, {pipeline_mode = #tpu.pipeline_mode<synchronous>, transform_indices = @transform_4, window_bounds = array<i64: 128, 128>}, {pipeline_mode = #tpu.pipeline_mode<synchronous>, transform_indices = @transform_5, window_bounds = array<i64: 1, 128>}, {pipeline_mode = #tpu.pipeline_mode<synchronous>, transform_indices = @transform_6, window_bounds = array<i64: 128, 128>}, {pipeline_mode = #tpu.pipeline_mode<synchronous>, transform_indices = @transform_7, window_bounds = array<i64: 1, 128>}, {transform_indices = @transform_8, window_bounds = array<i64: 8, 128>}, {transform_indices = @transform_9, window_bounds = array<i64: 8, 128>}]} {
    %c0 = arith.constant 0 : index
    %c0_0 = arith.constant 0 : index
    %0 = vector.load %arg1[%c0, %c0_0] : memref<8x32xf32, #tpu.memory_space<vmem>>, vector<8x32xf32>
    %1 = arith.truncf %0 : vector<8x32xf32> to vector<8x32xbf16>
    %c0_1 = arith.constant 0 : index
    %c0_2 = arith.constant 0 : index
    %2 = vector.load %arg3[%c0_1, %c0_2] : memref<32x128xbf16, #tpu.memory_space<vmem>>, vector<32x128xbf16>
    %cst = arith.constant dense<0.000000e+00> : vector<8x128xf32>
    %3 = tpu.matmul %1, %2, %cst {dimension_numbers = #tpu.dot_dimension_numbers<[1], [0], [0], [1], [0, 0, 1, 1], [], []>} : vector<8x32xbf16>, vector<32x128xbf16>, vector<8x128xf32> -> vector<8x128xf32>
    %c0_3 = arith.constant 0 : index
    %c0_4 = arith.constant 0 : index
    %4 = vector.load %arg4[%c0_3, %c0_4] : memref<1x128xf32, #tpu.memory_space<vmem>>, vector<1x128xf32>
    %5 = vector.broadcast %4 : vector<1x128xf32> to vector<8x128xf32>
    %6 = arith.addf %3, %5 : vector<8x128xf32>
    %7 = math.tanh %6 : vector<8x128xf32>
    %8 = arith.truncf %7 : vector<8x128xf32> to vector<8x128xbf16>
    %c0_5 = arith.constant 0 : index
    %c0_6 = arith.constant 0 : index
    %9 = vector.load %arg5[%c0_5, %c0_6] : memref<128x128xbf16, #tpu.memory_space<vmem>>, vector<128x128xbf16>
    %cst_7 = arith.constant dense<0.000000e+00> : vector<8x128xf32>
    %10 = tpu.matmul %8, %9, %cst_7 {dimension_numbers = #tpu.dot_dimension_numbers<[1], [0], [0], [1], [0, 0, 1, 1], [], []>} : vector<8x128xbf16>, vector<128x128xbf16>, vector<8x128xf32> -> vector<8x128xf32>
    %c0_8 = arith.constant 0 : index
    %c0_9 = arith.constant 0 : index
    %11 = vector.load %arg6[%c0_8, %c0_9] : memref<1x128xf32, #tpu.memory_space<vmem>>, vector<1x128xf32>
    %12 = vector.broadcast %11 : vector<1x128xf32> to vector<8x128xf32>
    %13 = arith.addf %10, %12 : vector<8x128xf32>
    %14 = math.tanh %13 : vector<8x128xf32>
    %15 = arith.truncf %14 : vector<8x128xf32> to vector<8x128xbf16>
    %c0_10 = arith.constant 0 : index
    %c0_11 = arith.constant 0 : index
    %16 = vector.load %arg7[%c0_10, %c0_11] : memref<128x128xbf16, #tpu.memory_space<vmem>>, vector<128x128xbf16>
    %cst_12 = arith.constant dense<0.000000e+00> : vector<8x128xf32>
    %17 = tpu.matmul %15, %16, %cst_12 {dimension_numbers = #tpu.dot_dimension_numbers<[1], [0], [0], [1], [0, 0, 1, 1], [], []>} : vector<8x128xbf16>, vector<128x128xbf16>, vector<8x128xf32> -> vector<8x128xf32>
    %c0_13 = arith.constant 0 : index
    %c0_14 = arith.constant 0 : index
    %18 = vector.load %arg8[%c0_13, %c0_14] : memref<1x128xf32, #tpu.memory_space<vmem>>, vector<1x128xf32>
    %19 = vector.broadcast %18 : vector<1x128xf32> to vector<8x128xf32>
    %20 = arith.addf %17, %19 : vector<8x128xf32>
    %21 = vector.extract_strided_slice %20 {offsets = [0, 127], sizes = [8, 1], strides = [1, 1]} : vector<8x128xf32> to vector<8x1xf32>
    %22 = tpu.iota {dimensions = array<i32: 1>} : vector<8x128xi32>
    %c8_i32 = arith.constant 8 : i32
    %23 = vector.broadcast %c8_i32 : i32 to vector<8x128xi32>
    %24 = arith.cmpi slt, %22, %23 : vector<8x128xi32>
    %cst_15 = arith.constant -1.000000e+30 : f32
    %25 = vector.broadcast %cst_15 : f32 to vector<8x128xf32>
    %26 = arith.select %24, %20, %25 : vector<8x128xi1>, vector<8x128xf32>
    %cst_16 = arith.constant dense<0xFF800000> : vector<8xf32>
    %27 = vector.multi_reduction <maximumf>, %26, %cst_16 [1] : vector<8x128xf32> to vector<8xf32>
    %28 = vector.shape_cast %27 : vector<8xf32> to vector<8x1xf32>
    %29 = vector.broadcast %28 : vector<8x1xf32> to vector<8x128xf32>
    %30 = arith.subf %26, %29 : vector<8x128xf32>
    %31 = math.exp %30 : vector<8x128xf32>
    %cst_17 = arith.constant dense<0.000000e+00> : vector<8xf32>
    %32 = vector.multi_reduction <add>, %31, %cst_17 [1] : vector<8x128xf32> to vector<8xf32>
    %33 = vector.shape_cast %32 : vector<8xf32> to vector<8x1xf32>
    %34 = tpu.reciprocal %33 {approx = true} : vector<8x1xf32> -> vector<8x1xf32>
    %35 = vector.broadcast %34 : vector<8x1xf32> to vector<8x128xf32>
    %36 = arith.mulf %31, %35 : vector<8x128xf32>
    %37 = vector.broadcast %28 : vector<8x1xf32> to vector<8x128xf32>
    %38 = arith.subf %26, %37 : vector<8x128xf32>
    %39 = math.log %33 : vector<8x1xf32>
    %40 = vector.broadcast %39 : vector<8x1xf32> to vector<8x128xf32>
    %41 = arith.subf %38, %40 : vector<8x128xf32>
    %c0_18 = arith.constant 0 : index
    %c0_19 = arith.constant 0 : index
    %42 = vector.load %arg9[%c0_18, %c0_19] : memref<8x128xf32, #tpu.memory_space<vmem>>, vector<8x128xf32>
    tpu.vector_store %arg9[%c0_18, %c0_19], %41 {strides = array<i32>} : memref<8x128xf32, #tpu.memory_space<vmem>>, vector<8x128xf32>,
    %c0_20 = arith.constant 0 : index
    %c0_21 = arith.constant 0 : index
    %43 = vector.load %arg2[%c0_20, %c0_21] : memref<8x1xi32, #tpu.memory_space<vmem>>, vector<8x1xi32>
    %44 = vector.broadcast %43 : vector<8x1xi32> to vector<8x128xi32>
    %45 = arith.cmpi eq, %22, %44 : vector<8x128xi32>
    %46 = arith.extui %45 : vector<8x128xi1> to vector<8x128xi32>
    %47 = arith.sitofp %46 : vector<8x128xi32> to vector<8x128xf32>
    %48 = arith.mulf %47, %41 : vector<8x128xf32>
    %cst_22 = arith.constant dense<0.000000e+00> : vector<8xf32>
    %49 = vector.multi_reduction <add>, %48, %cst_22 [1] : vector<8x128xf32> to vector<8xf32>
    %50 = vector.shape_cast %49 : vector<8xf32> to vector<8x1xf32>
    %51 = arith.mulf %36, %41 : vector<8x128xf32>
    %cst_23 = arith.constant dense<0.000000e+00> : vector<8xf32>
    %52 = vector.multi_reduction <add>, %51, %cst_23 [1] : vector<8x128xf32> to vector<8xf32>
    %53 = vector.shape_cast %52 : vector<8xf32> to vector<8x1xf32>
    %cst_24 = arith.constant 0.000000e+00 : f32
    %54 = vector.broadcast %cst_24 : f32 to vector<8x1xf32>
    %55 = arith.subf %54, %53 : vector<8x1xf32>
    %c0_i32 = arith.constant 0 : i32
    %56 = vector.broadcast %c0_i32 : i32 to vector<8x128xi32>
    %57 = arith.cmpi eq, %22, %56 : vector<8x128xi32>
    %58 = arith.extui %57 : vector<8x128xi1> to vector<8x128xi32>
    %59 = arith.sitofp %58 : vector<8x128xi32> to vector<8x128xf32>
    %c1_i32 = arith.constant 1 : i32
    %60 = vector.broadcast %c1_i32 : i32 to vector<8x128xi32>
    %61 = arith.cmpi eq, %22, %60 : vector<8x128xi32>
    %62 = arith.extui %61 : vector<8x128xi1> to vector<8x128xi32>
    %63 = arith.sitofp %62 : vector<8x128xi32> to vector<8x128xf32>
    %c2_i32 = arith.constant 2 : i32
    %64 = vector.broadcast %c2_i32 : i32 to vector<8x128xi32>
    %65 = arith.cmpi eq, %22, %64 : vector<8x128xi32>
    %66 = arith.extui %65 : vector<8x128xi1> to vector<8x128xi32>
    %67 = arith.sitofp %66 : vector<8x128xi32> to vector<8x128xf32>
    %68 = vector.broadcast %50 : vector<8x1xf32> to vector<8x128xf32>
    %69 = arith.mulf %68, %59 : vector<8x128xf32>
    %70 = vector.broadcast %55 : vector<8x1xf32> to vector<8x128xf32>
    %71 = arith.mulf %70, %63 : vector<8x128xf32>
    %72 = arith.addf %69, %71 : vector<8x128xf32>
    %73 = vector.broadcast %21 : vector<8x1xf32> to vector<8x128xf32>
    %74 = arith.mulf %73, %67 : vector<8x128xf32>
    %75 = arith.addf %72, %74 : vector<8x128xf32>
    %c0_25 = arith.constant 0 : index
    %c0_26 = arith.constant 0 : index
    %76 = vector.load %arg10[%c0_25, %c0_26] : memref<8x128xf32, #tpu.memory_space<vmem>>, vector<8x128xf32>
    tpu.vector_store %arg10[%c0_25, %c0_26], %75 {strides = array<i32>} : memref<8x128xf32, #tpu.memory_space<vmem>>, vector<8x128xf32>,
    return
  }
  func.func @transform_0(%arg0: i32) -> (i32, i32) {
    %c0_i32 = arith.constant 0 : i32
    %c0_i32_0 = arith.constant 0 : i32
    return %arg0, %c0_i32 : i32, i32
  }
  func.func @transform_1(%arg0: i32) -> (i32, i32) {
    %c0_i32 = arith.constant 0 : i32
    %c0_i32_0 = arith.constant 0 : i32
    return %arg0, %c0_i32 : i32, i32
  }
  func.func @transform_2(%arg0: i32) -> (i32, i32) {
    %c0_i32 = arith.constant 0 : i32
    %c0_i32_0 = arith.constant 0 : i32
    %c0_i32_1 = arith.constant 0 : i32
    return %c0_i32, %c0_i32_0 : i32, i32
  }
  func.func @transform_3(%arg0: i32) -> (i32, i32) {
    %c0_i32 = arith.constant 0 : i32
    %c0_i32_0 = arith.constant 0 : i32
    %c0_i32_1 = arith.constant 0 : i32
    return %c0_i32, %c0_i32_0 : i32, i32
  }
  func.func @transform_4(%arg0: i32) -> (i32, i32) {
    %c0_i32 = arith.constant 0 : i32
    %c0_i32_0 = arith.constant 0 : i32
    %c0_i32_1 = arith.constant 0 : i32
    return %c0_i32, %c0_i32_0 : i32, i32
  }
  func.func @transform_5(%arg0: i32) -> (i32, i32) {
    %c0_i32 = arith.constant 0 : i32
    %c0_i32_0 = arith.constant 0 : i32
    %c0_i32_1 = arith.constant 0 : i32
    return %c0_i32, %c0_i32_0 : i32, i32
  }
  func.func @transform_6(%arg0: i32) -> (i32, i32) {
    %c0_i32 = arith.constant 0 : i32
    %c0_i32_0 = arith.constant 0 : i32
    %c0_i32_1 = arith.constant 0 : i32
    return %c0_i32, %c0_i32_0 : i32, i32
  }
  func.func @transform_7(%arg0: i32) -> (i32, i32) {
    %c0_i32 = arith.constant 0 : i32
    %c0_i32_0 = arith.constant 0 : i32
    %c0_i32_1 = arith.constant 0 : i32
    return %c0_i32, %c0_i32_0 : i32, i32
  }
  func.func @transform_8(%arg0: i32) -> (i32, i32) {
    %c0_i32 = arith.constant 0 : i32
    %c0_i32_0 = arith.constant 0 : i32
    return %arg0, %c0_i32 : i32, i32
  }
  func.func @transform_9(%arg0: i32) -> (i32, i32) {
    %c0_i32 = arith.constant 0 : i32
    %c0_i32_0 = arith.constant 0 : i32
    return %arg0, %c0_i32 : i32, i32
  }
}

</mosaic_0001>

<llo_original>
// kernel: _run_kernel.1
$region0: #{_run_kernel.1}
  #allocation0 [shape = 'u32[]', space=smem, size = 0x4, offset = 0x4, fixed_abs, tag = 'smem constant byte address 0x4 - core index']
  #allocation1 [shape = 'u32[72,128]{1,0:T(1,128)}', space=vmem, size = 0x9000, scoped, tag = 'internal scratch']
  %s0 = inlined_call_operand.vmem [shape: f32[8,32], index: 0, kind: input, shape index: {}]
  %s1 = inlined_call_operand.vmem [shape: s32[8,1], index: 1, kind: input, shape index: {}]
  %s2 = inlined_call_operand.hbm [shape: bf16[32,128], index: 2, kind: input, shape index: {}]
  %s3 = inlined_call_operand.vmem [shape: f32[1,128], index: 3, kind: input, shape index: {}]
  %s4 = inlined_call_operand.hbm [shape: bf16[128,128], index: 4, kind: input, shape index: {}]
  %s5 = inlined_call_operand.vmem [shape: f32[1,128], index: 5, kind: input, shape index: {}]
  %s6 = inlined_call_operand.hbm [shape: bf16[128,128], index: 6, kind: input, shape index: {}]
  %s7 = inlined_call_operand.vmem [shape: f32[1,128], index: 7, kind: input, shape index: {}]
  %s8 = inlined_call_operand.hbm [shape: f32[8,128], index: 8, kind: output, shape index: {0}]
  %s9 = inlined_call_operand.hbm [shape: f32[8,128], index: 9, kind: output, shape index: {1}]
  %10 = xla_tuple %s8, %s9
  %s11 = sld [smem:[#allocation0]]
  $region62: #{_run_kernel.1} parent=0
    _
  %s13 = ssub.s32 1, %s11
  %s14 = scalar_select 0, %s13, %s11
  $region1: #{_run_kernel.1} parent=0
    #allocation2 [shape = 'u8[8192]{0}', space=vmem, size = 0x2000, scoped, tag = 'input window, operand 2, single buffered']
    #allocation3 [shape = 's32[1]{0}', space=sflag, size = 0x4, scoped, tag = 'scoped memory for _run_kernel.1']
    #allocation4 [shape = 's32[1]{0}', space=sflag, size = 0x4, scoped, tag = 'scoped memory for _run_kernel.1']
    #allocation5 [shape = 'u8[32768]{0}', space=vmem, size = 0x8000, scoped, tag = 'input window, operand 4, single buffered']
    #allocation6 [shape = 's32[1]{0}', space=sflag, size = 0x4, scoped, tag = 'scoped memory for _run_kernel.1']
    #allocation7 [shape = 'u8[32768]{0}', space=vmem, size = 0x8000, scoped, tag = 'input window, operand 6, single buffered']
    #allocation8 [shape = 'u8[4096]{0}', space=vmem, size = 0x1000, scoped, tag = 'output window, operand 0, single buffered']
    #allocation9 [shape = 'u8[4096]{0}', space=vmem, size = 0x1000, scoped, tag = 'output window, operand 1, single buffered']
    #allocation10 [shape = 's32[1]{0}', space=sflag, size = 0x4, scoped, tag = 'scoped memory for _run_kernel.1']
    %15 = vsyncpa [#allocation3], 0
    %16 = vsyncpa [#allocation6], 0
    %17 = vsyncpa [#allocation4], 0
    %18 = vsyncpa [#allocation10], 0
    // Predicated region
    $region2: #{_run_kernel.1} parent=1 // pred_check
      _
    $region3: #{_run_kernel.1} parent=1 // pred_check_branch
      %20 = sbr.rel (0) target = $region5
    $region4: #{_run_kernel.1} parent=1 // pred_region
      _
    $region5: #{_run_kernel.1} parent=1 // pred_fallthru
      _
    // Predicated region
    $region6: #{_run_kernel.1} parent=1 // pred_check
      _
    $region7: #{_run_kernel.1} parent=1 // pred_check_branch
      %22 = sbr.rel (0) target = $region9
    $region8: #{_run_kernel.1} parent=1 // pred_region
      _
    $region9: #{_run_kernel.1} parent=1 // pred_fallthru
      _
    // Predicated region
    $region10: #{_run_kernel.1} parent=1 // pred_check
      _
    $region11: #{_run_kernel.1} parent=1 // pred_check_branch
      %24 = sbr.rel (0) target = $region13
    $region12: #{_run_kernel.1} parent=1 // pred_region
      %26 = vsyncadd [#allocation3], 0
      %s27 = sshll.u32 %s2, 4
      %s28 = int_to_ptr.hbm [resolvable:$true] %s27
      %s29 = sshll.u32 [#allocation2], 4
      %s30 = int_to_ptr.vmem [resolvable:$true] %s29
      %35 = dma.hbm_to_vmem [thread:$0]  %s28, 256, %s30, [#allocation3], 64, 64, 4
    $region13: #{_run_kernel.1} parent=1 // pred_fallthru
      _
    // Predicated region
    $region14: #{_run_kernel.1} parent=1 // pred_check
      _
    $region15: #{_run_kernel.1} parent=1 // pred_check_branch
      %37 = sbr.rel (0) target = $region17
    $region16: #{_run_kernel.1} parent=1 // pred_region
      _
    $region17: #{_run_kernel.1} parent=1 // pred_fallthru
      _
    // Predicated region
    $region18: #{_run_kernel.1} parent=1 // pred_check
      _
    $region19: #{_run_kernel.1} parent=1 // pred_check_branch
      %39 = sbr.rel (0) target = $region21
    $region20: #{_run_kernel.1} parent=1 // pred_region
      %41 = vsyncadd [#allocation6], 0
      %s42 = sshll.u32 %s4, 4
      %s43 = int_to_ptr.hbm [resolvable:$true] %s42
      %s44 = sshll.u32 [#allocation5], 4
      %s45 = int_to_ptr.vmem [resolvable:$true] %s44
      %50 = dma.hbm_to_vmem [thread:$0]  %s43, 1024, %s45, [#allocation6], 64, 64, 4
    $region21: #{_run_kernel.1} parent=1 // pred_fallthru
      _
    // Predicated region
    $region22: #{_run_kernel.1} parent=1 // pred_check
      _
    $region23: #{_run_kernel.1} parent=1 // pred_check_branch
      %52 = sbr.rel (0) target = $region25
    $region24: #{_run_kernel.1} parent=1 // pred_region
      _
    $region25: #{_run_kernel.1} parent=1 // pred_fallthru
      _
    // Predicated region
    $region26: #{_run_kernel.1} parent=1 // pred_check
      _
    $region27: #{_run_kernel.1} parent=1 // pred_check_branch
      %54 = sbr.rel (0) target = $region29
    $region28: #{_run_kernel.1} parent=1 // pred_region
      %56 = vsyncadd [#allocation6], 0
      %s57 = sshll.u32 %s6, 4
      %s58 = int_to_ptr.hbm [resolvable:$true] %s57
      %s59 = sshll.u32 [#allocation7], 4
      %s60 = int_to_ptr.vmem [resolvable:$true] %s59
      %65 = dma.hbm_to_vmem [thread:$0]  %s58, 1024, %s60, [#allocation6], 64, 64, 4
    $region29: #{_run_kernel.1} parent=1 // pred_fallthru
      _
    // Predicated region
    $region30: #{_run_kernel.1} parent=1 // pred_check
      _
    $region31: #{_run_kernel.1} parent=1 // pred_check_branch
      %67 = sbr.rel (0) target = $region33
    $region32: #{_run_kernel.1} parent=1 // pred_region
      _
    $region33: #{_run_kernel.1} parent=1 // pred_fallthru
      _
    // Predicated region
    $region34: #{_run_kernel.1} parent=1 // pred_check
      _
    $region35: #{_run_kernel.1} parent=1 // pred_check_branch
      %69 = sbr.rel (0) target = $region37
    $region36: #{_run_kernel.1} parent=1 // pred_region
      %71 = dma.done [#allocation3], 256
    $region37: #{_run_kernel.1} parent=1 // pred_fallthru
      _
    // Predicated region
    $region38: #{_run_kernel.1} parent=1 // pred_check
      _
    $region39: #{_run_kernel.1} parent=1 // pred_check_branch
      %73 = sbr.rel (0) target = $region41
    $region40: #{_run_kernel.1} parent=1 // pred_region
      %75 = dma.done [#allocation6], 1024
    $region41: #{_run_kernel.1} parent=1 // pred_fallthru
      _
    // Predicated region
    $region42: #{_run_kernel.1} parent=1 // pred_check
      _
    $region43: #{_run_kernel.1} parent=1 // pred_check_branch
      %77 = sbr.rel (0) target = $region45
    $region44: #{_run_kernel.1} parent=1 // pred_region
      %79 = dma.done [#allocation6], 1024
    $region45: #{_run_kernel.1} parent=1 // pred_fallthru
      _
    %v81 = vld [vmem:[%s0] sm:$0xff]
    %v82 = vpack.c.bf16 %v81, %v81
    %v83 = vld [vmem:[#allocation2] sm:$0xf]
    %v84 = vld [vmem:[#allocation2 + $0x4] sm:$0xf]
    %v85 = vld [vmem:[#allocation2 + $0x8] sm:$0xf]
    %v86 = vld [vmem:[#allocation2 + $0xc] sm:$0xf]
    %v87 = vld [vmem:[%s3] sm:$0x1]
    %v89 = vperm.slane %v87, 0
    %v95 = vunpack.c.l.b16 %v83
    %v96 = vunpack.c.l.b16 %v84
    %v97 = vunpack.c.l.b16 %v85
    %v98 = vunpack.c.l.b16 %v86
    %v99 = vpack.c.b16 %v96, %v95
    %v100 = vpack.c.b16 %v98, %v97
    %vm103 = vcmask 261120
    %v105 = vsel %vm103, %v82, 0
    %107 = vmatpush.bf16.msra.mxu0 0
    %108 = vmatpush.bf16.msra.mxu0 0
    %109 = vmatpush.bf16.msra.mxu0 0
    %110 = vmatpush.bf16.msra.mxu0 0
    %111 = vmatpush.bf16.msra.mxu0 0
    %112 = vmatpush.bf16.msra.mxu0 0
    %113 = vmatpush.bf16.msra.mxu0 %v100
    %114 = vmatpush.bf16.msra.mxu0 %v99
    %115 = vmatmul.bf16.gmra.mxu0 %v105
    %v116 = vpop.f32.mrf.mxu0
    %v117 = vadd.f32 %v89, %v116
    %v118 = vpop.f32.mrf.mxu0
    %119 = vdwg.mxu0
    %v120 = vtanh.pop %v117
    %v121 = vpack.c.bf16 %v120, %v120
    %v122 = vld [vmem:[#allocation5] sm:$0xf]
    %v123 = vld [vmem:[#allocation5 + $0x4] sm:$0xf]
    %v124 = vld [vmem:[#allocation5 + $0x8] sm:$0xf]
    %v125 = vld [vmem:[#allocation5 + $0xc] sm:$0xf]
    %v126 = vld [vmem:[#allocation5 + $0x10] sm:$0xf]
    %v127 = vld [vmem:[#allocation5 + $0x14] sm:$0xf]
    %v128 = vld [vmem:[#allocation5 + $0x18] sm:$0xf]
    %v129 = vld [vmem:[#allocation5 + $0x1c] sm:$0xf]
    %v130 = vld [vmem:[#allocation5 + $0x20] sm:$0xf]
    %v131 = vld [vmem:[#allocation5 + $0x24] sm:$0xf]
    %v132 = vld [vmem:[#allocation5 + $0x28] sm:$0xf]
    %v133 = vld [vmem:[#allocation5 + $0x2c] sm:$0xf]
    %v134 = vld [vmem:[#allocation5 + $0x30] sm:$0xf]
    %v135 = vld [vmem:[#allocation5 + $0x34] sm:$0xf]
    %v136 = vld [vmem:[#allocation5 + $0x38] sm:$0xf]
    %v137 = vld [vmem:[#allocation5 + $0x3c] sm:$0xf]
    %v138 = vld [vmem:[%s5] sm:$0x1]
    %v140 = vperm.slane %v138, 0
    %v158 = vunpack.c.l.b16 %v122
    %v159 = vunpack.c.l.b16 %v123
    %v160 = vunpack.c.l.b16 %v124
    %v161 = vunpack.c.l.b16 %v125
    %v162 = vunpack.c.l.b16 %v126
    %v163 = vunpack.c.l.b16 %v127
    %v164 = vunpack.c.l.b16 %v128
    %v165 = vunpack.c.l.b16 %v129
    %v166 = vunpack.c.l.b16 %v130
    %v167 = vunpack.c.l.b16 %v131
    %v168 = vunpack.c.l.b16 %v132
    %v169 = vunpack.c.l.b16 %v133
    %v170 = vunpack.c.l.b16 %v134
    %v171 = vunpack.c.l.b16 %v135
    %v172 = vunpack.c.l.b16 %v136
    %v173 = vunpack.c.l.b16 %v137
    %v174 = vpack.c.b16 %v159, %v158
    %v175 = vpack.c.b16 %v161, %v160
    %v176 = vpack.c.b16 %v163, %v162
    %v177 = vpack.c.b16 %v165, %v164
    %v178 = vpack.c.b16 %v167, %v166
    %v179 = vpack.c.b16 %v169, %v168
    %v180 = vpack.c.b16 %v171, %v170
    %v181 = vpack.c.b16 %v173, %v172
    %190 = vmatpush.bf16.msra.mxu0 %v181
    %191 = vmatpush.bf16.msra.mxu0 %v180
    %192 = vmatpush.bf16.msra.mxu0 %v179
    %193 = vmatpush.bf16.msra.mxu0 %v178
    %194 = vmatpush.bf16.msra.mxu0 %v177
    %195 = vmatpush.bf16.msra.mxu0 %v176
    %196 = vmatpush.bf16.msra.mxu0 %v175
    %197 = vmatpush.bf16.msra.mxu0 %v174
    %198 = vmatmul.bf16.gmra.mxu0 %v121
    %v199 = vpop.f32.mrf.mxu0
    %v200 = vadd.f32 %v140, %v199
    %v201 = vpop.f32.mrf.mxu0
    %202 = vdwg.mxu0
    %v203 = vtanh.pop %v200
    %v204 = vpack.c.bf16 %v203, %v203
    %v205 = vld [vmem:[#allocation7] sm:$0xf]
    %v206 = vld [vmem:[#allocation7 + $0x4] sm:$0xf]
    %v207 = vld [vmem:[#allocation7 + $0x8] sm:$0xf]
    %v208 = vld [vmem:[#allocation7 + $0xc] sm:$0xf]
    %v209 = vld [vmem:[#allocation7 + $0x10] sm:$0xf]
    %v210 = vld [vmem:[#allocation7 + $0x14] sm:$0xf]
    %v211 = vld [vmem:[#allocation7 + $0x18] sm:$0xf]
    %v212 = vld [vmem:[#allocation7 + $0x1c] sm:$0xf]
    %v213 = vld [vmem:[#allocation7 + $0x20] sm:$0xf]
    %v214 = vld [vmem:[#allocation7 + $0x24] sm:$0xf]
    %v215 = vld [vmem:[#allocation7 + $0x28] sm:$0xf]
    %v216 = vld [vmem:[#allocation7 + $0x2c] sm:$0xf]
    %v217 = vld [vmem:[#allocation7 + $0x30] sm:$0xf]
    %v218 = vld [vmem:[#allocation7 + $0x34] sm:$0xf]
    %v219 = vld [vmem:[#allocation7 + $0x38] sm:$0xf]
    %v220 = vld [vmem:[#allocation7 + $0x3c] sm:$0xf]
    %v221 = vld [vmem:[%s7] sm:$0x1]
    %v223 = vperm.slane %v221, 0
    %v241 = vunpack.c.l.b16 %v205
    %v242 = vunpack.c.l.b16 %v206
    %v243 = vunpack.c.l.b16 %v207
    %v244 = vunpack.c.l.b16 %v208
    %v245 = vunpack.c.l.b16 %v209
    %v246 = vunpack.c.l.b16 %v210
    %v247 = vunpack.c.l.b16 %v211
    %v248 = vunpack.c.l.b16 %v212
    %v249 = vunpack.c.l.b16 %v213
    %v250 = vunpack.c.l.b16 %v214
    %v251 = vunpack.c.l.b16 %v215
    %v252 = vunpack.c.l.b16 %v216
    %v253 = vunpack.c.l.b16 %v217
    %v254 = vunpack.c.l.b16 %v218
    %v255 = vunpack.c.l.b16 %v219
    %v256 = vunpack.c.l.b16 %v220
    %v257 = vpack.c.b16 %v242, %v241
    %v258 = vpack.c.b16 %v244, %v243
    %v259 = vpack.c.b16 %v246, %v245
    %v260 = vpack.c.b16 %v248, %v247
    %v261 = vpack.c.b16 %v250, %v249
    %v262 = vpack.c.b16 %v252, %v251
    %v263 = vpack.c.b16 %v254, %v253
    %v264 = vpack.c.b16 %v256, %v255
    %273 = vmatpush.bf16.msra.mxu0 %v264
    %274 = vmatpush.bf16.msra.mxu0 %v263
    %275 = vmatpush.bf16.msra.mxu0 %v262
    %276 = vmatpush.bf16.msra.mxu0 %v261
    %277 = vmatpush.bf16.msra.mxu0 %v260
    %278 = vmatpush.bf16.msra.mxu0 %v259
    %279 = vmatpush.bf16.msra.mxu0 %v258
    %280 = vmatpush.bf16.msra.mxu0 %v257
    %281 = vmatmul.bf16.gmra.mxu0 %v204
    %v282 = vpop.f32.mrf.mxu0
    %v283 = vadd.f32 %v223, %v282
    %v284 = vpop.f32.mrf.mxu0
    %285 = vdwg.mxu0
    %v286 = vlaneseq
    %v287 = vand.u32 %v286, 127
    %vm288 = vcmp.lt.s32.totalorder %v287, 8
    %v289 = vsel %vm288, %v283, -1e+30
    %290 = vmax.xlane.f32.xlu0 %v289
    %v291 = vpop.xlane.xlu0 %290
    %v292 = vsub.f32 %v289, %v291
    %v293 = vmul.f32 %v292, 1.442695
    %v294 = vpow.pop %v293
    %295 = vadd.xlane.f32.xlu0 %v294
    %v296 = vpop.xlane.xlu0 %295
    %v297 = vrcp.pop %v296
    %v298 = vmul.f32 %v294, %v297
    %v299 = vlog2.pop %v296
    %v300 = vmul.f32 %v299, 0.6931472
    %v301 = vsub.f32 %v292, %v300
    %302 = vst [vmem:[#allocation8] sm:$0xff] %v301
    %v303 = vld [vmem:[%s1] sm:$0xff]
    %304 = vset.pattern.permute.xlu0 0
    %305 = vperm.xlu0 %304, %v303
    %v306 = vpop.permute.xlu0 %305
    %vm307 = vcmp.eq.s32.totalorder %v287, %v306
    %v308 = vsel %vm307, 1, 0
    %v309 = vcvt.s32.f32 %v308
    %v310 = vmul.f32 %v309, %v301
    %311 = vadd.xlane.f32.xlu0 %v310
    %v312 = vpop.xlane.xlu0 %311
    %v313 = vmul.f32 %v298, %v301
    %314 = vadd.xlane.f32.xlu0 %v313
    %v315 = vpop.xlane.xlu0 %314
    %v316 = vsub.f32 0.0, %v315
    %vm317 = vcmp.eq.s32.totalorder %v287, 0
    %v318 = vsel %vm317, 1, 0
    %v319 = vcvt.s32.f32 %v318
    %vm320 = vcmp.eq.s32.totalorder %v287, 1
    %v321 = vsel %vm320, 1, 0
    %v322 = vcvt.s32.f32 %v321
    %vm323 = vcmp.eq.s32.totalorder %v287, 2
    %v324 = vsel %vm323, 1, 0
    %v325 = vcvt.s32.f32 %v324
    %v326 = vmul.f32 %v312, %v319
    %v327 = vmul.f32 %v316, %v322
    %v328 = vadd.f32 %v326, %v327
    %330 = vset.pattern.permute.xlu0 127
    %331 = vperm.xlu0 %330, %v283
    %v332 = vpop.permute.xlu0 %331
    %v334 = vmul.f32 %v332, %v325
    %v335 = vadd.f32 %v328, %v334
    %336 = vst [vmem:[#allocation9] sm:$0xff] %v335
    // Predicated region
    $region46: #{_run_kernel.1} parent=1 // pred_check
      _
    $region47: #{_run_kernel.1} parent=1 // pred_check_branch
      %338 = sbr.rel (0) target = $region49
    $region48: #{_run_kernel.1} parent=1 // pred_region
      %340 = vsyncadd [#allocation4], 0
      %s342 = sshll.u32 [#allocation8], 4
      %s343 = int_to_ptr.vmem [resolvable:$true] %s342
      %s344 = sshll.u32 %s8, 4
      %s345 = int_to_ptr.hbm [resolvable:$true] %s344
      %347 = dma.vmem_to_hbm [thread:$0]  %s343, 128, %s345, [#allocation4]
    $region49: #{_run_kernel.1} parent=1 // pred_fallthru
      _
    // Predicated region
    $region50: #{_run_kernel.1} parent=1 // pred_check
      _
    $region51: #{_run_kernel.1} parent=1 // pred_check_branch
      %349 = sbr.rel (0) target = $region53
    $region52: #{_run_kernel.1} parent=1 // pred_region
      %351 = vsyncadd [#allocation10], 0
      %s353 = sshll.u32 [#allocation9], 4
      %s354 = int_to_ptr.vmem [resolvable:$true] %s353
      %s355 = sshll.u32 %s9, 4
      %s356 = int_to_ptr.hbm [resolvable:$true] %s355
      %358 = dma.vmem_to_hbm [thread:$0]  %s354, 128, %s356, [#allocation10]
    $region53: #{_run_kernel.1} parent=1 // pred_fallthru
      _
    // Predicated region
    $region54: #{_run_kernel.1} parent=1 // pred_check
      _
    $region55: #{_run_kernel.1} parent=1 // pred_check_branch
      %360 = sbr.rel (0) target = $region57
    $region56: #{_run_kernel.1} parent=1 // pred_region
      %362 = dma.done [#allocation4], 128
    $region57: #{_run_kernel.1} parent=1 // pred_fallthru
      _
    // Predicated region
    $region58: #{_run_kernel.1} parent=1 // pred_check
      _
    $region59: #{_run_kernel.1} parent=1 // pred_check_branch
      %364 = sbr.rel (0) target = $region61
    $region60: #{_run_kernel.1} parent=1 // pred_region
      %366 = dma.done [#allocation10], 128
    $region61: #{_run_kernel.1} parent=1 // pred_fallthru
      _
    %367 = vsyncpa [#allocation3], 1
    %368 = vsyncpa [#allocation6], 1
    %369 = vsyncpa [#allocation4], 1
    %370 = vsyncpa [#allocation10], 1

</llo_original>
